<compile_context>
chip_gen: v6e
topology: v6e:2x2x1
jax: 0.10.0
libtpu: 0.0.40
codegen_flags: <defaults>
</compile_context>

<pallas_src>
import functools

import jax
import jax.numpy as jnp
from jax.experimental import pallas as pl
from jax.experimental.pallas import tpu as pltpu

HIDDEN = 128          # per-head hidden width (PyTorch spec)
OUT_LANES = 128       # lane-dense combined output width
PACK_LANES = 2 * HIDDEN   # 256 lanes in the packed param blob
BLOCK_B = 512         # batch tile for large rollout batches


def _round_up(x, m):
    return ((x + m - 1) // m) * m


def pack_params(params, input_dim, n_actions):
    """Build the single packed parameter blob ONCE (re-run after optimizer steps).

    Layout (rows, all segment starts 8-row aligned; 256 lanes):
      [0          , D_pad)      : [w1 | w3]            (layer-1 weights, zero-padded rows)
      [D_pad      , D_pad+8)    : row 0 = [b1 | b3]    (layer-1 bias)
      [D_pad+8    , D_pad+264)  : blockdiag(w2, w4) padded to 256 lanes (layer-2 weights)
      [D_pad+264  , D_pad+272)  : row 0 = [b2 | b4]    (layer-2 bias, lanes 0..n_actions)
    """
    assert n_actions + 1 <= OUT_LANES, "n_actions must fit in one 128-lane output"
    d_pad = max(8, _round_up(input_dim, 8))
    rows = d_pad + 8 + 2 * HIDDEN + 8

    p = jnp.zeros((rows, PACK_LANES), jnp.float32)
    # layer-1 weights [w1 | w3]
    p = p.at[:input_dim, :HIDDEN].set(params["w1"])
    p = p.at[:input_dim, HIDDEN:].set(params["w3"])
    # layer-1 bias [b1 | b3]
    p = p.at[d_pad, :HIDDEN].set(params["b1"][0])
    p = p.at[d_pad, HIDDEN:].set(params["b3"][0])
    # layer-2 block-diagonal weights (only first 128 lanes are used by the kernel)
    r0 = d_pad + 8
    p = p.at[r0:r0 + HIDDEN, :n_actions].set(params["w2"])
    p = p.at[r0 + HIDDEN:r0 + 2 * HIDDEN, n_actions].set(params["w4"][:, 0])
    # layer-2 bias
    r1 = r0 + 2 * HIDDEN
    p = p.at[r1, :n_actions].set(params["b2"][0])
    p = p.at[r1, n_actions].set(params["b4"][0, 0])
    return p, d_pad


def actor_critic_kernel(x_ref, p_ref, o_ref, *, d_pad, n_actions):
    """Fused actor+critic forward for one batch tile.

    x_ref : (TB, D_pad)          input rows (zero-padded batch rows allowed)
    p_ref : (D_pad+272, 256)     packed params (see pack_params layout)
    o_ref : (TB, 128)            lanes [0, n) = softmax probs, lane n = value, rest 0
    """
    # ---- static, tile-aligned slices of the packed param blob ----
    w13 = p_ref[:d_pad, :]                                    # (D_pad, 256)
    b13 = p_ref[d_pad:d_pad + 1, :]                           # (1, 256)
    r0 = d_pad + 8
    w24 = p_ref[r0:r0 + 2 * HIDDEN, :OUT_LANES]               # (256, 128)
    b24 = p_ref[r0 + 2 * HIDDEN:r0 + 2 * HIDDEN + 1, :OUT_LANES]   # (1, 128)

    # ---- layer 1 (actor + critic fused, bias added in-kernel on the VPU) ----
    h = jnp.dot(x_ref[...], w13, preferred_element_type=jnp.float32) + b13
    h = jnp.maximum(h, 0.0)                                   # (TB, 256) ReLU

    # ---- layer 2 (block-diagonal fusion: logits and value in one dot) ----
    z = jnp.dot(h, w24, preferred_element_type=jnp.float32) + b24   # (TB, 128)

    # ---- masked softmax over the first n_actions lanes ----
    lane = jax.lax.broadcasted_iota(jnp.int32, z.shape, 1)
    act_mask = lane < n_actions
    logits = jnp.where(act_mask, z, -1e30)                    # finite sentinel
    m = jnp.max(logits, axis=-1, keepdims=True)
    e = jnp.where(act_mask, jnp.exp(logits - m), 0.0)
    s = jnp.sum(e, axis=-1, keepdims=True)
    inv = pl.reciprocal(s, approx=True)                       # EUP slot
    inv = inv * (2.0 - s * inv)                               # Newton step -> f32 accurate
    prob = e * inv

    # lane n_actions carries the critic value, all other masked lanes are 0
    o_ref[...] = jnp.where(lane == n_actions, z, prob)


@functools.partial(jax.jit, static_argnames=("n_actions",))
def actor_critic_forward(x, packed, *, n_actions):
    """x: (B, D) f32, packed: output of pack_params.  Returns (prob, value)."""
    B, D = x.shape
    d_pad = packed.shape[0] - (8 + 2 * HIDDEN + 8)

    # --- batch tiling: single block for small B, 512-row parallel grid for large B ---
    b_pad = max(8, _round_up(B, 8))
    tb = BLOCK_B if b_pad > BLOCK_B else b_pad
    b_total = _round_up(b_pad, tb)
    grid = (b_total // tb,)

    # one fused pad (rows to b_total, cols to d_pad); no scatters
    x_pad = jnp.pad(x.astype(jnp.float32), ((0, b_total - B), (0, d_pad - D)))

    flops = 2 * b_total * (d_pad * 2 * HIDDEN + 2 * HIDDEN * OUT_LANES)
    bytes_accessed = 4 * (x_pad.size + packed.size + b_total * OUT_LANES)

    out = pl.pallas_call(
        functools.partial(actor_critic_kernel, d_pad=d_pad, n_actions=n_actions),
        grid=grid,
        out_shape=jax.ShapeDtypeStruct((b_total, OUT_LANES), jnp.float32),
        in_specs=[
            pl.BlockSpec((tb, d_pad), lambda i: (i, 0)),          # batch tile
            pl.BlockSpec(packed.shape, lambda i: (0, 0)),         # params stay resident
        ],
        out_specs=pl.BlockSpec((tb, OUT_LANES), lambda i: (i, 0)),
        compiler_params=pltpu.CompilerParams(
            dimension_semantics=("parallel",)),
        cost_estimate=pl.CostEstimate(flops=flops,
                                      transcendentals=b_total * n_actions,
                                      bytes_accessed=bytes_accessed),
    )(x_pad, packed)

    prob = out[:B, :n_actions]
    value = out[:B, n_actions:n_actions + 1]
    return prob, value


def init_params(key, input_dim, n_actions, hidden=HIDDEN):
    """Deterministic init mimicking PyTorch Linear default (U[-1/sqrt(fan_in), +])."""
    ks = jax.random.split(key, 8)

    def lin(kw, kb, fan_in, fan_out):
        bound = 1.0 / jnp.sqrt(fan_in)
        w = jax.random.uniform(kw, (fan_in, fan_out), jnp.float32, -bound, bound)
        b = jax.random.uniform(kb, (1, fan_out), jnp.float32, -bound, bound)
        return w, b

    w1, b1 = lin(ks[0], ks[1], input_dim, hidden)
    w2, b2 = lin(ks[2], ks[3], hidden, n_actions)
    w3, b3 = lin(ks[4], ks[5], input_dim, hidden)
    w4, b4 = lin(ks[6], ks[7], hidden, 1)
    return {"w1": w1, "b1": b1, "w2": w2, "b2": b2,
            "w3": w3, "b3": b3, "w4": w4, "b4": b4}


def reference_forward(x, p):
    h_a = jnp.maximum(x @ p["w1"] + p["b1"], 0.0)
    logits = h_a @ p["w2"] + p["b2"]
    prob = jax.nn.softmax(logits, axis=-1)
    h_c = jnp.maximum(x @ p["w3"] + p["b3"], 0.0)
    value = h_c @ p["w4"] + p["b4"]
    return prob, value


if __name__ == "__main__":
    key = jax.random.PRNGKey(0)
    B, input_dim, n_actions = 2, 8, 4          # LunarLander-v2: obs=8, actions=4

    kx, kp = jax.random.split(key)
    x = jax.random.normal(kx, (B, input_dim), jnp.float32)
    params = init_params(kp, input_dim, n_actions)

    # Packing is done ONCE here (re-pack after each optimizer update in PPO).
    packed, _ = pack_params(params, input_dim, n_actions)
    packed = jax.block_until_ready(packed)

    prob, value = actor_critic_forward(x, packed, n_actions=n_actions)
    jax.block_until_ready((prob, value))

    prob_ref, value_ref = reference_forward(x, params)
    assert prob.shape == (B, n_actions) and value.shape == (B, 1)
    assert jnp.allclose(prob, prob_ref, atol=1e-5, rtol=1e-5)
    assert jnp.allclose(value, value_ref, atol=1e-5, rtol=1e-5)
    assert jnp.allclose(jnp.sum(prob, axis=-1), 1.0, atol=1e-5)

    print("KERNEL_OK")
</pallas_src>

<mosaic_0001>
module attributes {stable_mosaic.version = 11 : i64} {
  func.func @actor_critic_kernel(%arg0: i32, %arg1: memref<8x8xf32, #tpu.memory_space<vmem>>, %arg2: memref<280x256xf32, #tpu.memory_space<vmem>>, %arg3: memref<8x128xf32, #tpu.memory_space<vmem>>) attributes {dimension_semantics = [#tpu.dimension_semantics<parallel>], iteration_bounds = array<i64: 1>, scalar_prefetch = 0 : i64, scratch_operands = 0 : i64, tpu.core_type = #tpu.core_type<tc>, window_params = [{transform_indices = @transform_0, window_bounds = array<i64: 8, 8>}, {pipeline_mode = #tpu.pipeline_mode<synchronous>, transform_indices = @transform_1, window_bounds = array<i64: 280, 256>}, {transform_indices = @transform_2, window_bounds = array<i64: 8, 128>}]} {
    %c0 = arith.constant 0 : index
    %c0_0 = arith.constant 0 : index
    %0 = vector.load %arg2[%c0, %c0_0] : memref<280x256xf32, #tpu.memory_space<vmem>>, vector<8x256xf32>
    %c8 = arith.constant 8 : index
    %c0_1 = arith.constant 0 : index
    %1 = vector.load %arg2[%c8, %c0_1] : memref<280x256xf32, #tpu.memory_space<vmem>>, vector<1x256xf32>
    %c16 = arith.constant 16 : index
    %c0_2 = arith.constant 0 : index
    %2 = vector.load %arg2[%c16, %c0_2] : memref<280x256xf32, #tpu.memory_space<vmem>>, vector<256x128xf32>
    %c272 = arith.constant 272 : index
    %c0_3 = arith.constant 0 : index
    %3 = vector.load %arg2[%c272, %c0_3] : memref<280x256xf32, #tpu.memory_space<vmem>>, vector<1x128xf32>
    %c0_4 = arith.constant 0 : index
    %c0_5 = arith.constant 0 : index
    %4 = vector.load %arg1[%c0_4, %c0_5] : memref<8x8xf32, #tpu.memory_space<vmem>>, vector<8x8xf32>
    %cst = arith.constant dense<0.000000e+00> : vector<8x256xf32>
    %5 = tpu.matmul %4, %0, %cst {dimension_numbers = #tpu.dot_dimension_numbers<[1], [0], [0], [1], [0, 0, 1, 1], [], []>} : vector<8x8xf32>, vector<8x256xf32>, vector<8x256xf32> -> vector<8x256xf32>
    %6 = vector.broadcast %1 : vector<1x256xf32> to vector<8x256xf32>
    %7 = arith.addf %5, %6 : vector<8x256xf32>
    %cst_6 = arith.constant 0.000000e+00 : f32
    %8 = vector.broadcast %cst_6 : f32 to vector<8x256xf32>
    %9 = arith.maximumf %7, %8 : vector<8x256xf32>
    %cst_7 = arith.constant dense<0.000000e+00> : vector<8x128xf32>
    %10 = tpu.matmul %9, %2, %cst_7 {dimension_numbers = #tpu.dot_dimension_numbers<[1], [0], [0], [1], [0, 0, 1, 1], [], []>} : vector<8x256xf32>, vector<256x128xf32>, vector<8x128xf32> -> vector<8x128xf32>
    %11 = vector.broadcast %3 : vector<1x128xf32> to vector<8x128xf32>
    %12 = arith.addf %10, %11 : vector<8x128xf32>
    %13 = tpu.iota {dimensions = array<i32: 1>} : vector<8x128xi32>
    %c4_i32 = arith.constant 4 : i32
    %14 = vector.broadcast %c4_i32 : i32 to vector<8x128xi32>
    %15 = arith.cmpi slt, %13, %14 : vector<8x128xi32>
    %cst_8 = arith.constant -1.000000e+30 : f32
    %16 = vector.broadcast %cst_8 : f32 to vector<8x128xf32>
    %17 = arith.select %15, %12, %16 : vector<8x128xi1>, vector<8x128xf32>
    %cst_9 = arith.constant dense<0xFF800000> : vector<8xf32>
    %18 = vector.multi_reduction <maximumf>, %17, %cst_9 [1] : vector<8x128xf32> to vector<8xf32>
    %19 = vector.shape_cast %18 : vector<8xf32> to vector<8x1xf32>
    %20 = vector.broadcast %19 : vector<8x1xf32> to vector<8x128xf32>
    %21 = arith.subf %17, %20 : vector<8x128xf32>
    %22 = math.exp %21 : vector<8x128xf32>
    %cst_10 = arith.constant 0.000000e+00 : f32
    %23 = vector.broadcast %cst_10 : f32 to vector<8x128xf32>
    %24 = arith.select %15, %22, %23 : vector<8x128xi1>, vector<8x128xf32>
    %cst_11 = arith.constant dense<0.000000e+00> : vector<8xf32>
    %25 = vector.multi_reduction <add>, %24, %cst_11 [1] : vector<8x128xf32> to vector<8xf32>
    %26 = vector.shape_cast %25 : vector<8xf32> to vector<8x1xf32>
    %27 = tpu.reciprocal %26 {approx = true} : vector<8x1xf32> -> vector<8x1xf32>
    %28 = arith.mulf %26, %27 : vector<8x1xf32>
    %cst_12 = arith.constant 2.000000e+00 : f32
    %29 = vector.broadcast %cst_12 : f32 to vector<8x1xf32>
    %30 = arith.subf %29, %28 : vector<8x1xf32>
    %31 = arith.mulf %27, %30 : vector<8x1xf32>
    %32 = vector.broadcast %31 : vector<8x1xf32> to vector<8x128xf32>
    %33 = arith.mulf %24, %32 : vector<8x128xf32>
    %c4_i32_13 = arith.constant 4 : i32
    %34 = vector.broadcast %c4_i32_13 : i32 to vector<8x128xi32>
    %35 = arith.cmpi eq, %13, %34 : vector<8x128xi32>
    %36 = arith.select %35, %12, %33 : vector<8x128xi1>, vector<8x128xf32>
    %c0_14 = arith.constant 0 : index
    %c0_15 = arith.constant 0 : index
    %37 = vector.load %arg3[%c0_14, %c0_15] : memref<8x128xf32, #tpu.memory_space<vmem>>, vector<8x128xf32>
    tpu.vector_store %arg3[%c0_14, %c0_15], %36 {strides = array<i32>} : memref<8x128xf32, #tpu.memory_space<vmem>>, vector<8x128xf32>,
    return
  }
  func.func @transform_0(%arg0: i32) -> (i32, i32) {
    %c0_i32 = arith.constant 0 : i32
    %c0_i32_0 = arith.constant 0 : i32
    return %arg0, %c0_i32 : i32, i32
  }
  func.func @transform_1(%arg0: i32) -> (i32, i32) {
    %c0_i32 = arith.constant 0 : i32
    %c0_i32_0 = arith.constant 0 : i32
    %c0_i32_1 = arith.constant 0 : i32
    return %c0_i32, %c0_i32_0 : i32, i32
  }
  func.func @transform_2(%arg0: i32) -> (i32, i32) {
    %c0_i32 = arith.constant 0 : i32
    %c0_i32_0 = arith.constant 0 : i32
    return %arg0, %c0_i32 : i32, i32
  }
}

</mosaic_0001>

<llo_original>
// kernel: actor_critic_forward.1
$region0: #{actor_critic_forward.1}
  #allocation0 [shape = 'u32[]', space=smem, size = 0x4, offset = 0x4, fixed_abs, tag = 'smem constant byte address 0x4 - core index']
  #allocation1 [shape = 'u32[144,128]{1,0:T(1,128)}', space=vmem, size = 0x12000, scoped, tag = 'internal scratch']
  %s0 = inlined_call_operand.vmem [shape: f32[8,8], index: 0, kind: input, shape index: {}]
  %s1 = inlined_call_operand.hbm [shape: f32[280,256], index: 1, kind: input, shape index: {}]
  %s2 = inlined_call_operand.vmem [shape: f32[8,128], index: 2, kind: output, shape index: {}]
  %s3 = sld [smem:[#allocation0]]
  $region22: #{actor_critic_forward.1} parent=0
    _
  %s5 = ssub.s32 1, %s3
  %s6 = scalar_select 0, %s5, %s3
  $region1: #{actor_critic_forward.1} parent=0
    #allocation2 [shape = 'u8[286720]{0}', space=vmem, size = 0x46000, scoped, tag = 'input window, operand 1, single buffered']
    #allocation3 [shape = 's32[1]{0}', space=sflag, size = 0x4, scoped, tag = 'scoped memory for actor_critic_forward.1']
    %7 = vsyncpa [#allocation3], 0
    // Predicated region
    $region2: #{actor_critic_forward.1} parent=1 // pred_check
      _
    $region3: #{actor_critic_forward.1} parent=1 // pred_check_branch
      %9 = sbr.rel (0) target = $region5
    $region4: #{actor_critic_forward.1} parent=1 // pred_region
      _
    $region5: #{actor_critic_forward.1} parent=1 // pred_fallthru
      _
    // Predicated region
    $region6: #{actor_critic_forward.1} parent=1 // pred_check
      _
    $region7: #{actor_critic_forward.1} parent=1 // pred_check_branch
      %11 = sbr.rel (0) target = $region9
    $region8: #{actor_critic_forward.1} parent=1 // pred_region
      %s13 = ssub.s32 8960, 8960
      %14 = vsyncadd [#allocation3], %s13
      %s15 = sshll.u32 [#allocation2], 4
      %s16 = int_to_ptr.vmem [resolvable:$true] %s15
      %21 = dma.hbm_to_vmem [thread:$0]  %s1, 8960, %s16, [#allocation3], 256, 256, 16
    $region9: #{actor_critic_forward.1} parent=1 // pred_fallthru
      _
    // Predicated region
    $region10: #{actor_critic_forward.1} parent=1 // pred_check
      _
    $region11: #{actor_critic_forward.1} parent=1 // pred_check_branch
      %23 = sbr.rel (0) target = $region13
    $region12: #{actor_critic_forward.1} parent=1 // pred_region
      %24 = dma.done [#allocation3], 8960
    $region13: #{actor_critic_forward.1} parent=1 // pred_fallthru
      _
    %v25 = vld [vmem:[#allocation2] sm:$0xff]
    %v26 = vld [vmem:[#allocation2 + $0x8] sm:$0xff]
    %s27 = scalar_lea.vmem [#allocation2], 16
    %v28 = vld [vmem:[%s27] ss:$8 sm:$0x3]
    %v29 = vld [vmem:[#allocation2 + $0x20] sm:$0xff]
    %v30 = vld [vmem:[#allocation2 + $0x30] sm:$0xff]
    %v31 = vld [vmem:[#allocation2 + $0x40] sm:$0xff]
    %v32 = vld [vmem:[#allocation2 + $0x50] sm:$0xff]
    %v33 = vld [vmem:[#allocation2 + $0x60] sm:$0xff]
    %v34 = vld [vmem:[#allocation2 + $0x70] sm:$0xff]
    %v35 = vld [vmem:[#allocation2 + $0x80] sm:$0xff]
    %v36 = vld [vmem:[#allocation2 + $0x90] sm:$0xff]
    %v37 = vld [vmem:[#allocation2 + $0xa0] sm:$0xff]
    %v38 = vld [vmem:[#allocation2 + $0xb0] sm:$0xff]
    %v39 = vld [vmem:[#allocation2 + $0xc0] sm:$0xff]
    %v40 = vld [vmem:[#allocation2 + $0xd0] sm:$0xff]
    %v41 = vld [vmem:[#allocation2 + $0xe0] sm:$0xff]
    %v42 = vld [vmem:[#allocation2 + $0xf0] sm:$0xff]
    %v43 = vld [vmem:[#allocation2 + $0x100] sm:$0xff]
    %v44 = vld [vmem:[#allocation2 + $0x110] sm:$0xff]
    %v45 = vld [vmem:[#allocation2 + $0x120] sm:$0xff]
    %v46 = vld [vmem:[#allocation2 + $0x130] sm:$0xff]
    %v47 = vld [vmem:[#allocation2 + $0x140] sm:$0xff]
    %v48 = vld [vmem:[#allocation2 + $0x150] sm:$0xff]
    %v49 = vld [vmem:[#allocation2 + $0x160] sm:$0xff]
    %v50 = vld [vmem:[#allocation2 + $0x170] sm:$0xff]
    %v51 = vld [vmem:[#allocation2 + $0x180] sm:$0xff]
    %v52 = vld [vmem:[#allocation2 + $0x190] sm:$0xff]
    %v53 = vld [vmem:[#allocation2 + $0x1a0] sm:$0xff]
    %v54 = vld [vmem:[#allocation2 + $0x1b0] sm:$0xff]
    %v55 = vld [vmem:[#allocation2 + $0x1c0] sm:$0xff]
    %v56 = vld [vmem:[#allocation2 + $0x1d0] sm:$0xff]
    %v57 = vld [vmem:[#allocation2 + $0x1e0] sm:$0xff]
    %v58 = vld [vmem:[#allocation2 + $0x1f0] sm:$0xff]
    %v59 = vld [vmem:[#allocation2 + $0x200] sm:$0xff]
    %v60 = vld [vmem:[#allocation2 + $0x210] sm:$0xff]
    %v61 = vld [vmem:[#allocation2 + $0x220] ss:$0 sm:$0xff]
    %v62 = vld [vmem:[%s0] sm:$0xff]
    %v64 = vlaneseq
    %v65 = vshrl.u32 %v64, 7
    %v66 = vsub.s32 0, %v65
    %v67 = vrot.slane %v28, %v66
    %v68 = vlaneseq
    %v69 = vshrl.u32 %v68, 7
    %v70 = vsub.s32 1, %v69
    %v71 = vrot.slane %v28, %v70
    %vm74 = vcmask 64512
    %v76 = vsel %vm74, %v62, 0
    %78 = vmatprep.subr.mxu0 0.0
    %79 = vmatpush1.msra.mxu0 0.0
    %80 = vmatprep.subr.mxu0 0.0
    %81 = vmatpush1.msra.mxu0 0.0
    %82 = vmatprep.subr.mxu0 0.0
    %83 = vmatpush1.msra.mxu0 0.0
    %84 = vmatprep.subr.mxu0 0.0
    %85 = vmatpush1.msra.mxu0 0.0
    %86 = vmatprep.subr.mxu0 0.0
    %87 = vmatpush1.msra.mxu0 0.0
    %88 = vmatprep.subr.mxu0 0.0
    %89 = vmatpush1.msra.mxu0 0.0
    %90 = vmatprep.subr.mxu0 0.0
    %91 = vmatpush1.msra.mxu0 0.0
    %92 = vmatprep.subr.mxu0 0.0
    %93 = vmatpush1.msra.mxu0 0.0
    %94 = vmatprep.subr.mxu0 0.0
    %95 = vmatpush1.msra.mxu0 0.0
    %96 = vmatprep.subr.mxu0 0.0
    %97 = vmatpush1.msra.mxu0 0.0
    %98 = vmatprep.subr.mxu0 0.0
    %99 = vmatpush1.msra.mxu0 0.0
    %100 = vmatprep.subr.mxu0 0.0
    %101 = vmatpush1.msra.mxu0 0.0
    %102 = vmatprep.subr.mxu0 0.0
    %103 = vmatpush1.msra.mxu0 0.0
    %104 = vmatprep.subr.mxu0 0.0
    %105 = vmatpush1.msra.mxu0 0.0
    %106 = vmatprep.subr.mxu0 0.0
    %107 = vmatpush1.msra.mxu0 0.0
    %108 = vmatprep.subr.mxu0 %v26
    %109 = vmatpush1.msra.mxu0 %v25
    %110 = vmatprep.subr.mxu0 0.0
    %111 = vmatpush2.msra.mxu0 0.0
    %112 = vmatprep.subr.mxu0 0.0
    %113 = vmatpush2.msra.mxu0 0.0
    %114 = vmatprep.subr.mxu0 0.0
    %115 = vmatpush2.msra.mxu0 0.0
    %116 = vmatprep.subr.mxu0 0.0
    %117 = vmatpush2.msra.mxu0 0.0
    %118 = vmatprep.subr.mxu0 0.0
    %119 = vmatpush2.msra.mxu0 0.0
    %120 = vmatprep.subr.mxu0 0.0
    %121 = vmatpush2.msra.mxu0 0.0
    %122 = vmatprep.subr.mxu0 0.0
    %123 = vmatpush2.msra.mxu0 0.0
    %124 = vmatprep.subr.mxu0 0.0
    %125 = vmatpush2.msra.mxu0 0.0
    %126 = vmatprep.subr.mxu0 0.0
    %127 = vmatpush2.msra.mxu0 0.0
    %128 = vmatprep.subr.mxu0 0.0
    %129 = vmatpush2.msra.mxu0 0.0
    %130 = vmatprep.subr.mxu0 0.0
    %131 = vmatpush2.msra.mxu0 0.0
    %132 = vmatprep.subr.mxu0 0.0
    %133 = vmatpush2.msra.mxu0 0.0
    %134 = vmatprep.subr.mxu0 0.0
    %135 = vmatpush2.msra.mxu0 0.0
    %136 = vmatprep.subr.mxu0 0.0
    %137 = vmatpush2.msra.mxu0 0.0
    %138 = vmatprep.subr.mxu0 0.0
    %139 = vmatpush2.msra.mxu0 0.0
    %140 = vmatprep.subr.mxu0 0.0
    %141 = vmatpush2.msra.mxu0 0.0
    %142 = vmatprep.mubr.f32.mxu0 0.0
    %143 = vmatmul.mubr.f32.gmra.mxu0 %v76
    %v144 = vpop.f32.mrf.mxu0
    %v145 = vadd.f32 %v67, %v144
    %v146 = vpop.f32.mrf.mxu0
    %v147 = vadd.f32 %v71, %v146
    %148 = vdwg.mxu0
    %v149 = vmax.f32 %v145, 0.0
    %v150 = vmax.f32 %v147, 0.0
    %151 = vmatprep.subr.mxu0 0.0
    %152 = vmatpush1.msra.mxu0 %v44
    %153 = vmatprep.subr.mxu0 0.0
    %154 = vmatpush1.msra.mxu0 %v43
    %155 = vmatprep.subr.mxu0 0.0
    %156 = vmatpush1.msra.mxu0 %v42
    %157 = vmatprep.subr.mxu0 0.0
    %158 = vmatpush1.msra.mxu0 %v41
    %159 = vmatprep.subr.mxu0 0.0
    %160 = vmatpush1.msra.mxu0 %v40
    %161 = vmatprep.subr.mxu0 0.0
    %162 = vmatpush1.msra.mxu0 %v39
    %163 = vmatprep.subr.mxu0 0.0
    %164 = vmatpush1.msra.mxu0 %v38
    %165 = vmatprep.subr.mxu0 0.0
    %166 = vmatpush1.msra.mxu0 %v37
    %167 = vmatprep.subr.mxu0 0.0
    %168 = vmatpush1.msra.mxu0 %v36
    %169 = vmatprep.subr.mxu0 0.0
    %170 = vmatpush1.msra.mxu0 %v35
    %171 = vmatprep.subr.mxu0 0.0
    %172 = vmatpush1.msra.mxu0 %v34
    %173 = vmatprep.subr.mxu0 0.0
    %174 = vmatpush1.msra.mxu0 %v33
    %175 = vmatprep.subr.mxu0 0.0
    %176 = vmatpush1.msra.mxu0 %v32
    %177 = vmatprep.subr.mxu0 0.0
    %178 = vmatpush1.msra.mxu0 %v31
    %179 = vmatprep.subr.mxu0 0.0
    %180 = vmatpush1.msra.mxu0 %v30
    %181 = vmatprep.subr.mxu0 0.0
    %182 = vmatpush1.msra.mxu0 %v29
    %183 = vmatprep.subr.mxu0 0.0
    %184 = vmatpush2.msra.mxu0 %v60
    %185 = vmatprep.subr.mxu0 0.0
    %186 = vmatpush2.msra.mxu0 %v59
    %187 = vmatprep.subr.mxu0 0.0
    %188 = vmatpush2.msra.mxu0 %v58
    %189 = vmatprep.subr.mxu0 0.0
    %190 = vmatpush2.msra.mxu0 %v57
    %191 = vmatprep.subr.mxu0 0.0
    %192 = vmatpush2.msra.mxu0 %v56
    %193 = vmatprep.subr.mxu0 0.0
    %194 = vmatpush2.msra.mxu0 %v55
    %195 = vmatprep.subr.mxu0 0.0
    %196 = vmatpush2.msra.mxu0 %v54
    %197 = vmatprep.subr.mxu0 0.0
    %198 = vmatpush2.msra.mxu0 %v53
    %199 = vmatprep.subr.mxu0 0.0
    %200 = vmatpush2.msra.mxu0 %v52
    %201 = vmatprep.subr.mxu0 0.0
    %202 = vmatpush2.msra.mxu0 %v51
    %203 = vmatprep.subr.mxu0 0.0
    %204 = vmatpush2.msra.mxu0 %v50
    %205 = vmatprep.subr.mxu0 0.0
    %206 = vmatpush2.msra.mxu0 %v49
    %207 = vmatprep.subr.mxu0 0.0
    %208 = vmatpush2.msra.mxu0 %v48
    %209 = vmatprep.subr.mxu0 0.0
    %210 = vmatpush2.msra.mxu0 %v47
    %211 = vmatprep.subr.mxu0 0.0
    %212 = vmatpush2.msra.mxu0 %v46
    %213 = vmatprep.subr.mxu0 0.0
    %214 = vmatpush2.msra.mxu0 %v45
    %215 = vmatprep.mubr.f32.mxu0 %v150
    %216 = vmatmul.mubr.f32.gmra.mxu0 %v149
    %v217 = vpop.f32.mrf.mxu0
    %v218 = vadd.f32 %v61, %v217
    %v219 = vpop.f32.mrf.mxu0
    %220 = vdwg.mxu0
    %v221 = vlaneseq
    %v222 = vand.u32 %v221, 127
    %vm223 = vcmp.lt.s32.totalorder %v222, 4
    %v224 = vsel %vm223, %v218, -1e+30
    %225 = vmax.xlane.f32.xlu0 %v224
    %v226 = vpop.xlane.xlu0 %225
    %v227 = vsub.f32 %v224, %v226
    %v228 = vmul.f32 %v227, 1.442695
    %v229 = vpow.pop %v228
    %v230 = vsel %vm223, %v229, 0.0
    %231 = vadd.xlane.f32.xlu0 %v230
    %v232 = vpop.xlane.xlu0 %231
    %v233 = vrcp.pop %v232
    %v234 = vmul.f32 %v232, %v233
    %v235 = vsub.f32 2.0, %v234
    %v236 = vmul.f32 %v233, %v235
    %v237 = vmul.f32 %v230, %v236
    %vm238 = vcmp.eq.s32.totalorder %v222, 4
    %v239 = vsel %vm238, %v218, %v237
    %240 = vst [vmem:[%s2] sm:$0xff] %v239
    // Predicated region
    $region14: #{actor_critic_forward.1} parent=1 // pred_check
      _
    $region15: #{actor_critic_forward.1} parent=1 // pred_check_branch
      %242 = sbr.rel (0) target = $region17
    $region16: #{actor_critic_forward.1} parent=1 // pred_region
      _
    $region17: #{actor_critic_forward.1} parent=1 // pred_fallthru
      _
    // Predicated region
    $region18: #{actor_critic_forward.1} parent=1 // pred_check
      _
    $region19: #{actor_critic_forward.1} parent=1 // pred_check_branch
      %244 = sbr.rel (0) target = $region21
    $region20: #{actor_critic_forward.1} parent=1 // pred_region
      _
    $region21: #{actor_critic_forward.1} parent=1 // pred_fallthru
      _
    %245 = vsyncpa [#allocation3], 1

</llo_original>
